<compile_context>
chip_gen: v7x
topology: tpu7x:2x2x1
jax: 0.10.0
libtpu: 0.0.40
codegen_flags: <defaults>
</compile_context>

<pallas_src>
import functools

import jax
import jax.numpy as jnp
from jax.experimental import pallas as pl
from jax.experimental.pallas import tpu as pltpu


# ----------------------------------------------------------------------------
# VMEM budget (valid on every TPU generation)
# ----------------------------------------------------------------------------
def _vmem_limit_bytes():
    try:
        cap = int(pltpu.get_tpu_info().vmem_capacity_bytes)
    except Exception:          # older jax / attribute mismatch: assume v7x size
        cap = 64 << 20
    return min((cap * 3) // 4, 96 << 20)


_VMEM_LIMIT = _vmem_limit_bytes()


# ----------------------------------------------------------------------------
# Helpers
# ----------------------------------------------------------------------------
def _pool2x2(y):
    """2x2 / stride-2 max pool of an (H, W, C) f32 tile.

    Two steps: H first (leading-dim split, layout-free), then W, so only a single
    sublane-splitting relayout is needed.
    """
    H, W, C = y.shape
    yh = y.reshape(H // 2, 2, W, C)
    yh = jnp.maximum(yh[:, 0], yh[:, 1])                  # (H//2, W, C)
    yw = yh.reshape(H // 2, W // 2, 2, C)
    return jnp.maximum(yw[:, :, 0, :], yw[:, :, 1, :])    # (H//2, W//2, C)


# ----------------------------------------------------------------------------
# Pallas kernels
# ----------------------------------------------------------------------------
def _conv3x3_kernel(x_ref, w_ref, b_ref, *rest, relu, pool, dual, folded,
                    use_scratch):
    """3x3 / stride-1 / pad-1 conv with fused bias, ReLU and optional 2x2 pool.

    x_ref : (1, H, W, Cin)  input tile (one batch element, un-padded, f32/bf16)
    w_ref : (3, 3*Cin, TCO) bf16 weights, dw folded into the contraction dim
    b_ref : (1, TCO)        f32 bias for this Cout block
    rest  : 1 or 2 output refs (pre-/post-ReLU if dual), then an optional
            ((H+2)*W, 3*Cin) bf16 xk scratch (only when use_scratch).
    """
    n_out = 2 if dual else 1
    o_refs = rest[:n_out]
    xk_ref = rest[n_out] if use_scratch else None

    _, H, W, Cin = x_ref.shape
    TCO = w_ref.shape[-1]
    HW = H * W

    def shifted_w():
        # padding=1 along W: column-shifted copies with zero boundary columns.
        x = x_ref[0].astype(jnp.bfloat16)                 # (H, W, Cin)
        zcol = jnp.zeros((H, 1, Cin), jnp.bfloat16)
        if W > 1:
            x_m1 = jnp.concatenate([zcol, x[:, :W - 1, :]], axis=1)   # x[:, w-1]
            x_p1 = jnp.concatenate([x[:, 1:, :], zcol], axis=1)       # x[:, w+1]
        else:
            x_m1, x_p1 = jnp.zeros_like(x), jnp.zeros_like(x)
        return x_m1, x, x_p1

    if folded:
        # dw folded into K: one (H+2, W, 3*Cin) operand, three big-K matmuls.
        def build():
            x_m1, x0, x_p1 = shifted_w()
            xk = jnp.concatenate([x_m1, x0, x_p1], axis=2)            # (H,W,3Cin)
            zrow = jnp.zeros((1, W, 3 * Cin), jnp.bfloat16)
            xk = jnp.concatenate([zrow, xk, zrow], axis=0)            # pad H
            # NOTE: collapsing (H+2, W) is layout-free only when W is a multiple
            # of the sublane tile; at small post-pool W Mosaic inserts copies
            # (perf hazard only, tiny tiles).
            return xk.reshape((H + 2) * W, 3 * Cin)

        if use_scratch:
            # Hoist the shifted/padded operand: built once per batch element,
            # reused for every Cout block (Cout grid axis is "arbitrary").
            @pl.when(pl.program_id(1) == 0)
            def _():
                xk_ref[...] = build()
            xk = xk_ref[...]
        else:
            xk = build()

        acc = jnp.dot(xk[0:HW], w_ref[0], preferred_element_type=jnp.float32)
        for dh in (1, 2):
            acc += jnp.dot(xk[dh * W:dh * W + HW], w_ref[dh],
                           preferred_element_type=jnp.float32)
    else:
        # Tiny / unaligned Cin (conv1_1 Cin=3, conv1_2/2_1 Cin=64): skip the
        # lane concat that would need 64-lane realignment and do nine small-K
        # matmuls; still only 3 shifted-operand constructions.
        zrow = jnp.zeros((1, W, Cin), jnp.bfloat16)
        taps = []
        for xs in shifted_w():
            xs = jnp.concatenate([zrow, xs, zrow], axis=0)            # pad H
            taps.append(xs.reshape((H + 2) * W, Cin))
        acc = jnp.zeros((HW, TCO), jnp.float32)
        for dh in range(3):
            for dw in range(3):
                acc += jnp.dot(taps[dw][dh * W:dh * W + HW],
                               w_ref[dh, dw * Cin:(dw + 1) * Cin, :],
                               preferred_element_type=jnp.float32)

    # f32 epilogue (bias / ReLU / pool) — no bf16 VPU work (v5e-safe).
    y = (acc + b_ref[...]).reshape(H, W, TCO)

    if dual:       # emit pre-ReLU and post-ReLU (only when vgg_choose needs it)
        o_refs[0][0] = y.astype(o_refs[0].dtype)
        o_refs[1][0] = jnp.maximum(y, 0.0).astype(o_refs[1].dtype)
    else:
        if relu:
            y = jnp.maximum(y, 0.0)
        if pool:   # fused 2x2 / stride-2 max pool
            y = _pool2x2(y)
        o_refs[0][0] = y.astype(o_refs[0].dtype)


def _maxpool2_kernel(x_ref, o_ref):
    # Standalone pool (only used on the vgg_maxpooling path); f32 compare.
    o_ref[0] = _pool2x2(x_ref[0].astype(jnp.float32)).astype(o_ref.dtype)


# ----------------------------------------------------------------------------
# Wrappers (pallas_call plumbing)
# ----------------------------------------------------------------------------
def conv3x3(x, w, b, *, relu=True, pool=False, dual=False, tco=None,
            out_dtype=jnp.float32):
    """x: (N,H,W,Cin) NHWC (f32 or bf16), w: (3,3,Cin,Cout) f32, b: (Cout,) f32.

    out_dtype: single dtype, or (pre_relu_dtype, post_relu_dtype) when dual.
    """
    assert not (pool and dual)
    N, H, W, Cin = x.shape
    Cout = w.shape[-1]
    if pool:
        assert H % 2 == 0 and W % 2 == 0
    if tco is None:
        tco = Cout                 # one weight block per layer -> single DMA
    tco = min(tco, Cout)
    assert Cout % tco == 0
    n_co = Cout // tco
    Ho, Wo = (H // 2, W // 2) if pool else (H, W)

    folded = (Cin % 128 == 0)          # lane-aligned dw-folded contraction
    use_scratch = folded and (n_co > 1)

    # dw folded into K once; MXU operands in bf16 (accumulation stays f32).
    wk = w.reshape(3, 3 * Cin, Cout).astype(jnp.bfloat16)
    b2 = b.reshape(1, Cout).astype(jnp.float32)

    kernel = functools.partial(_conv3x3_kernel, relu=relu, pool=pool, dual=dual,
                               folded=folded, use_scratch=use_scratch)

    if dual:
        if isinstance(out_dtype, (tuple, list)):
            pre_dt, post_dt = out_dtype
        else:
            pre_dt = post_dt = out_dtype
        out_shape = (jax.ShapeDtypeStruct((N, H, W, Cout), pre_dt),
                     jax.ShapeDtypeStruct((N, H, W, Cout), post_dt))
        out_specs = (pl.BlockSpec((1, H, W, tco), lambda n, j: (n, 0, 0, j)),
                     pl.BlockSpec((1, H, W, tco), lambda n, j: (n, 0, 0, j)))
        out_bytes = N * H * W * Cout * (jnp.dtype(pre_dt).itemsize
                                        + jnp.dtype(post_dt).itemsize)
    else:
        out_shape = jax.ShapeDtypeStruct((N, Ho, Wo, Cout), out_dtype)
        out_specs = pl.BlockSpec((1, Ho, Wo, tco), lambda n, j: (n, 0, 0, j))
        out_bytes = N * Ho * Wo * Cout * jnp.dtype(out_dtype).itemsize

    scratch_shapes = []
    if use_scratch:
        scratch_shapes = [pltpu.VMEM(((H + 2) * W, 3 * Cin), jnp.bfloat16)]

    cost = pl.CostEstimate(
        flops=2 * N * H * W * 9 * Cin * Cout,
        transcendentals=0,
        bytes_accessed=(x.size * x.dtype.itemsize + wk.size * 2
                        + b2.size * 4 + out_bytes),
    )

    return pl.pallas_call(
        kernel,
        out_shape=out_shape,
        grid_spec=pltpu.PrefetchScalarGridSpec(
            num_scalar_prefetch=0,
            grid=(N, n_co),
            in_specs=[
                pl.BlockSpec((1, H, W, Cin), lambda n, j: (n, 0, 0, 0)),
                pl.BlockSpec((3, 3 * Cin, tco), lambda n, j: (0, 0, j)),
                pl.BlockSpec((1, tco), lambda n, j: (0, j)),
            ],
            out_specs=out_specs,
            scratch_shapes=scratch_shapes,
        ),
        compiler_params=pltpu.CompilerParams(
            # Batch axis parallel (megacore / v7x 2 TCs); Cout axis carries the
            # xk scratch when tco < Cout, so it must be "arbitrary".
            dimension_semantics=("parallel", "arbitrary"),
            vmem_limit_bytes=_VMEM_LIMIT,
        ),
        cost_estimate=cost,
    )(x, wk, b2)


def maxpool2(x):
    """Standalone 2x2/stride-2 max pool (NHWC); pools that directly follow a conv
    are fused into the conv kernel instead."""
    N, H, W, C = x.shape
    assert H % 2 == 0 and W % 2 == 0
    return pl.pallas_call(
        _maxpool2_kernel,
        out_shape=jax.ShapeDtypeStruct((N, H // 2, W // 2, C), x.dtype),
        grid_spec=pltpu.PrefetchScalarGridSpec(
            num_scalar_prefetch=0,
            grid=(N,),
            in_specs=[pl.BlockSpec((1, H, W, C), lambda n: (n, 0, 0, 0))],
            out_specs=pl.BlockSpec((1, H // 2, W // 2, C),
                                   lambda n: (n, 0, 0, 0)),
        ),
        compiler_params=pltpu.CompilerParams(
            dimension_semantics=("parallel",),
            vmem_limit_bytes=_VMEM_LIMIT,
        ),
        cost_estimate=pl.CostEstimate(
            flops=x.size, transcendentals=0,
            bytes_accessed=x.size * x.dtype.itemsize
            + (x.size // 4) * x.dtype.itemsize),
    )(x)


# ----------------------------------------------------------------------------
# Vgg16 parameters + forward (mirrors the PyTorch module)
# ----------------------------------------------------------------------------
VGG_CFG = [
    ("conv1_1", 3, 64), ("conv1_2", 64, 64),
    ("conv2_1", 64, 128), ("conv2_2", 128, 128),
    ("conv3_1", 128, 256), ("conv3_2", 256, 256), ("conv3_3", 256, 256),
    ("conv4_1", 256, 512), ("conv4_2", 512, 512), ("conv4_3", 512, 512),
    ("conv5_1", 512, 512), ("conv5_2", 512, 512), ("conv5_3", 512, 512),
]


def init_vgg16_params(key):
    params = {}
    for name, cin, cout in VGG_CFG:
        key, kw, kb = jax.random.split(key, 3)
        std = (2.0 / (9.0 * cin)) ** 0.5
        params[name] = {
            "w": jax.random.normal(kw, (3, 3, cin, cout), jnp.float32) * std,
            "b": jax.random.normal(kb, (cout,), jnp.float32) * 0.01,
        }
    return params


def vgg16_forward(params, x_nchw, vgg_choose="relu5_3", vgg_maxpooling=False,
                  act_dtype=jnp.bfloat16):
    """Replicates Vgg16.forward(X, opt).  Input/output in NCHW like PyTorch.

    Intermediate activations travel as `act_dtype` (bf16 by default); the tensor
    the caller asks for is produced in f32.  NOTE: the PyTorch module applies
    F.relu(..., inplace=True), so its returned 'conv4_3'/'conv5_3' tensors are
    mutated; here we return the (intended) pre-ReLU values, like v2 did.
    """
    f32 = jnp.float32

    def c(name, h, **kw):
        p = params[name]
        return conv3x3(h, p["w"], p["b"], **kw)

    def dt(name):
        return f32 if vgg_choose == name else act_dtype

    h = jnp.transpose(x_nchw, (0, 2, 3, 1))        # NCHW -> NHWC (glue)

    h = c("conv1_1", h, out_dtype=act_dtype)
    h = c("conv1_2", h, pool=True, out_dtype=act_dtype)   # ReLU + fused pool
    h = c("conv2_1", h, out_dtype=act_dtype)
    h = c("conv2_2", h, pool=True, out_dtype=act_dtype)
    h = c("conv3_1", h, out_dtype=act_dtype)
    h = c("conv3_2", h, out_dtype=act_dtype)
    h = c("conv3_3", h, pool=(vgg_choose != "no_maxpool"), out_dtype=act_dtype)

    relu4_1 = c("conv4_1", h, out_dtype=dt("relu4_1"))
    relu4_2 = c("conv4_2", relu4_1, out_dtype=dt("relu4_2"))
    if vgg_choose == "conv4_3":
        conv4_3, relu4_3 = c("conv4_3", relu4_2, dual=True,
                             out_dtype=(f32, act_dtype))
    else:
        conv4_3 = None
        relu4_3 = c("conv4_3", relu4_2, out_dtype=dt("relu4_3"))
    h = relu4_3
    if vgg_choose != "no_maxpool" and vgg_maxpooling:
        h = maxpool2(h)
    relu5_1 = c("conv5_1", h, out_dtype=dt("relu5_1"))
    relu5_2 = c("conv5_2", relu5_1, out_dtype=dt("relu5_2"))
    if vgg_choose == "conv5_3":
        conv5_3, relu5_3 = c("conv5_3", relu5_2, dual=True,
                             out_dtype=(f32, act_dtype))
    else:
        conv5_3 = None
        relu5_3 = c("conv5_3", relu5_2, out_dtype=f32)

    outs = {
        "conv4_3": conv4_3, "relu4_2": relu4_2, "relu4_1": relu4_1,
        "relu4_3": relu4_3, "conv5_3": conv5_3, "relu5_1": relu5_1,
        "relu5_2": relu5_2,
    }
    # NOTE: the PyTorch `elif ... == 'relu5_3' or 'maxpool'` branch is always
    # truthy, so anything not matched above returns relu5_3 — replicated here.
    out = outs.get(vgg_choose)
    if out is None:
        out = relu5_3
    out = out.astype(jnp.float32)
    return jnp.transpose(out, (0, 3, 1, 2))        # back to NCHW


# ----------------------------------------------------------------------------
if __name__ == "__main__":
    key = jax.random.PRNGKey(0)
    k_params, k_x, k_c = jax.random.split(key, 3)
    kc1, kc2, kc3 = jax.random.split(k_c, 3)

    def conv_ref(x, w, b):
        return jax.lax.conv_general_dilated(
            x, w, window_strides=(1, 1), padding="SAME",
            dimension_numbers=("NHWC", "HWIO", "NHWC")) + b

    # 1) nine-tap path (small Cin), fused ReLU (loose tol: bf16 MXU).
    xc = jax.random.normal(kc1, (1, 8, 8, 16), jnp.float32)
    wc = jax.random.normal(kc2, (3, 3, 16, 32), jnp.float32) * 0.1
    bc = jax.random.normal(kc3, (32,), jnp.float32) * 0.1
    got = conv3x3(xc, wc, bc, relu=True)
    ref = jax.nn.relu(conv_ref(xc, wc, bc))
    assert jnp.allclose(got, ref, rtol=5e-2, atol=5e-2), \
        float(jnp.max(jnp.abs(got - ref)))

    # 2) folded-K path with multiple Cout blocks -> exercises the hoisted xk
    #    VMEM scratch (@pl.when on the "arbitrary" Cout axis).
    x2 = jax.random.normal(kc1, (2, 8, 8, 128), jnp.float32) * 0.1
    w2 = jax.random.normal(kc2, (3, 3, 128, 256), jnp.float32) * 0.05
    b2 = jax.random.normal(kc3, (256,), jnp.float32) * 0.1
    got2 = conv3x3(x2, w2, b2, relu=True, tco=128)
    ref2 = jax.nn.relu(conv_ref(x2, w2, b2))
    assert jnp.allclose(got2, ref2, rtol=5e-2, atol=5e-2), \
        float(jnp.max(jnp.abs(got2 - ref2)))

    # 3) dual (pre-/post-ReLU) outputs.
    pre, post = conv3x3(xc, wc, bc, dual=True,
                        out_dtype=(jnp.float32, jnp.float32))
    assert jnp.allclose(pre, conv_ref(xc, wc, bc), rtol=5e-2, atol=5e-2)
    assert jnp.allclose(post, jnp.maximum(pre, 0.0))

    # 4) standalone pool (vgg_maxpooling path).
    xp = jax.random.normal(kc1, (1, 4, 4, 8), jnp.float32)
    pref = jnp.max(xp.reshape(1, 2, 2, 2, 2, 8), axis=(2, 4))
    assert jnp.allclose(maxpool2(xp), pref)

    # 5) Full Vgg16 forward: batch=2, 3 channels, 16x16 spatial.
    params = init_vgg16_params(k_params)
    x = jax.random.normal(k_x, (2, 3, 16, 16), jnp.float32)
    fwd = jax.jit(functools.partial(
        vgg16_forward, vgg_choose="relu5_3", vgg_maxpooling=False))
    out = jax.block_until_ready(fwd(params, x))

    assert out.shape == (2, 512, 2, 2), out.shape
    assert bool(jnp.all(jnp.isfinite(out)))
    print("KERNEL_OK")
</pallas_src>

<mosaic_0001>
module attributes {stable_mosaic.version = 11 : i64} {
  func.func @_conv3x3_kernel(%arg0: i32, %arg1: i32, %arg2: memref<1x8x8x16xf32, #tpu.memory_space<vmem>>, %arg3: memref<3x48x32xbf16, #tpu.memory_space<vmem>>, %arg4: memref<1x32xf32, #tpu.memory_space<vmem>>, %arg5: memref<1x8x8x32xf32, #tpu.memory_space<vmem>>) attributes {dimension_semantics = [#tpu.dimension_semantics<parallel>, #tpu.dimension_semantics<arbitrary>], iteration_bounds = array<i64: 1, 1>, scalar_prefetch = 0 : i64, scratch_operands = 0 : i64, tpu.core_type = #tpu.core_type<tc>, window_params = [{transform_indices = @transform_0, window_bounds = array<i64: 1, 8, 8, 16>}, {transform_indices = @transform_1, window_bounds = array<i64: 3, 48, 32>}, {transform_indices = @transform_2, window_bounds = array<i64: 1, 32>}, {transform_indices = @transform_3, window_bounds = array<i64: 1, 8, 8, 32>}]} {
    %cst = arith.constant 0.000000e+00 : bf16
    %0 = vector.broadcast %cst : bf16 to vector<1x8x16xbf16>
    %c0 = arith.constant 0 : index
    %c0_0 = arith.constant 0 : index
    %c0_1 = arith.constant 0 : index
    %c0_2 = arith.constant 0 : index
    %1 = vector.load %arg2[%c0, %c0_0, %c0_1, %c0_2] : memref<1x8x8x16xf32, #tpu.memory_space<vmem>>, vector<1x8x8x16xf32>
    %2 = vector.shape_cast %1 : vector<1x8x8x16xf32> to vector<8x8x16xf32>
    %3 = arith.truncf %2 : vector<8x8x16xf32> to vector<8x8x16xbf16>
    %cst_3 = arith.constant 0.000000e+00 : bf16
    %4 = vector.broadcast %cst_3 : bf16 to vector<8x1x16xbf16>
    %5 = vector.extract_strided_slice %3 {offsets = [0, 0, 0], sizes = [8, 7, 16], strides = [1, 1, 1]} : vector<8x8x16xbf16> to vector<8x7x16xbf16>
    %6 = tpu.concatenate %4, %5 in 1 : vector<8x1x16xbf16>, vector<8x7x16xbf16> -> vector<8x8x16xbf16>
    %7 = vector.extract_strided_slice %3 {offsets = [0, 1, 0], sizes = [8, 7, 16], strides = [1, 1, 1]} : vector<8x8x16xbf16> to vector<8x7x16xbf16>
    %8 = tpu.concatenate %7, %4 in 1 : vector<8x7x16xbf16>, vector<8x1x16xbf16> -> vector<8x8x16xbf16>
    %9 = tpu.concatenate %0, %6, %0 in 0 : vector<1x8x16xbf16>, vector<8x8x16xbf16>, vector<1x8x16xbf16> -> vector<10x8x16xbf16>
    %10 = vector.shape_cast %9 : vector<10x8x16xbf16> to vector<80x16xbf16>
    %11 = tpu.concatenate %0, %3, %0 in 0 : vector<1x8x16xbf16>, vector<8x8x16xbf16>, vector<1x8x16xbf16> -> vector<10x8x16xbf16>
    %12 = vector.shape_cast %11 : vector<10x8x16xbf16> to vector<80x16xbf16>
    %13 = tpu.concatenate %0, %8, %0 in 0 : vector<1x8x16xbf16>, vector<8x8x16xbf16>, vector<1x8x16xbf16> -> vector<10x8x16xbf16>
    %14 = vector.shape_cast %13 : vector<10x8x16xbf16> to vector<80x16xbf16>
    %cst_4 = arith.constant 0.000000e+00 : f32
    %15 = vector.broadcast %cst_4 : f32 to vector<64x32xf32>
    %16 = vector.extract_strided_slice %10 {offsets = [0, 0], sizes = [64, 16], strides = [1, 1]} : vector<80x16xbf16> to vector<64x16xbf16>
    %c0_5 = arith.constant 0 : index
    %c0_6 = arith.constant 0 : index
    %c0_7 = arith.constant 0 : index
    %17 = vector.load %arg3[%c0_5, %c0_6, %c0_7] : memref<3x48x32xbf16, #tpu.memory_space<vmem>>, vector<1x16x32xbf16>
    %18 = vector.shape_cast %17 : vector<1x16x32xbf16> to vector<16x32xbf16>
    %cst_8 = arith.constant dense<0.000000e+00> : vector<64x32xf32>
    %19 = tpu.matmul %16, %18, %cst_8 {dimension_numbers = #tpu.dot_dimension_numbers<[1], [0], [0], [1], [0, 0, 1, 1], [], []>} : vector<64x16xbf16>, vector<16x32xbf16>, vector<64x32xf32> -> vector<64x32xf32>
    %20 = arith.addf %15, %19 : vector<64x32xf32>
    %21 = vector.extract_strided_slice %12 {offsets = [0, 0], sizes = [64, 16], strides = [1, 1]} : vector<80x16xbf16> to vector<64x16xbf16>
    %c0_9 = arith.constant 0 : index
    %c16 = arith.constant 16 : index
    %c0_10 = arith.constant 0 : index
    %22 = vector.load %arg3[%c0_9, %c16, %c0_10] : memref<3x48x32xbf16, #tpu.memory_space<vmem>>, vector<1x16x32xbf16>
    %23 = vector.shape_cast %22 : vector<1x16x32xbf16> to vector<16x32xbf16>
    %cst_11 = arith.constant dense<0.000000e+00> : vector<64x32xf32>
    %24 = tpu.matmul %21, %23, %cst_11 {dimension_numbers = #tpu.dot_dimension_numbers<[1], [0], [0], [1], [0, 0, 1, 1], [], []>} : vector<64x16xbf16>, vector<16x32xbf16>, vector<64x32xf32> -> vector<64x32xf32>
    %25 = arith.addf %20, %24 : vector<64x32xf32>
    %26 = vector.extract_strided_slice %14 {offsets = [0, 0], sizes = [64, 16], strides = [1, 1]} : vector<80x16xbf16> to vector<64x16xbf16>
    %c0_12 = arith.constant 0 : index
    %c32 = arith.constant 32 : index
    %c0_13 = arith.constant 0 : index
    %27 = vector.load %arg3[%c0_12, %c32, %c0_13] : memref<3x48x32xbf16, #tpu.memory_space<vmem>>, vector<1x16x32xbf16>
    %28 = vector.shape_cast %27 : vector<1x16x32xbf16> to vector<16x32xbf16>
    %cst_14 = arith.constant dense<0.000000e+00> : vector<64x32xf32>
    %29 = tpu.matmul %26, %28, %cst_14 {dimension_numbers = #tpu.dot_dimension_numbers<[1], [0], [0], [1], [0, 0, 1, 1], [], []>} : vector<64x16xbf16>, vector<16x32xbf16>, vector<64x32xf32> -> vector<64x32xf32>
    %30 = arith.addf %25, %29 : vector<64x32xf32>
    %31 = vector.extract_strided_slice %10 {offsets = [8, 0], sizes = [64, 16], strides = [1, 1]} : vector<80x16xbf16> to vector<64x16xbf16>
    %c1 = arith.constant 1 : index
    %c0_15 = arith.constant 0 : index
    %c0_16 = arith.constant 0 : index
    %32 = vector.load %arg3[%c1, %c0_15, %c0_16] : memref<3x48x32xbf16, #tpu.memory_space<vmem>>, vector<1x16x32xbf16>
    %33 = vector.shape_cast %32 : vector<1x16x32xbf16> to vector<16x32xbf16>
    %cst_17 = arith.constant dense<0.000000e+00> : vector<64x32xf32>
    %34 = tpu.matmul %31, %33, %cst_17 {dimension_numbers = #tpu.dot_dimension_numbers<[1], [0], [0], [1], [0, 0, 1, 1], [], []>} : vector<64x16xbf16>, vector<16x32xbf16>, vector<64x32xf32> -> vector<64x32xf32>
    %35 = arith.addf %30, %34 : vector<64x32xf32>
    %36 = vector.extract_strided_slice %12 {offsets = [8, 0], sizes = [64, 16], strides = [1, 1]} : vector<80x16xbf16> to vector<64x16xbf16>
    %c1_18 = arith.constant 1 : index
    %c16_19 = arith.constant 16 : index
    %c0_20 = arith.constant 0 : index
    %37 = vector.load %arg3[%c1_18, %c16_19, %c0_20] : memref<3x48x32xbf16, #tpu.memory_space<vmem>>, vector<1x16x32xbf16>
    %38 = vector.shape_cast %37 : vector<1x16x32xbf16> to vector<16x32xbf16>
    %cst_21 = arith.constant dense<0.000000e+00> : vector<64x32xf32>
    %39 = tpu.matmul %36, %38, %cst_21 {dimension_numbers = #tpu.dot_dimension_numbers<[1], [0], [0], [1], [0, 0, 1, 1], [], []>} : vector<64x16xbf16>, vector<16x32xbf16>, vector<64x32xf32> -> vector<64x32xf32>
    %40 = arith.addf %35, %39 : vector<64x32xf32>
    %41 = vector.extract_strided_slice %14 {offsets = [8, 0], sizes = [64, 16], strides = [1, 1]} : vector<80x16xbf16> to vector<64x16xbf16>
    %c1_22 = arith.constant 1 : index
    %c32_23 = arith.constant 32 : index
    %c0_24 = arith.constant 0 : index
    %42 = vector.load %arg3[%c1_22, %c32_23, %c0_24] : memref<3x48x32xbf16, #tpu.memory_space<vmem>>, vector<1x16x32xbf16>
    %43 = vector.shape_cast %42 : vector<1x16x32xbf16> to vector<16x32xbf16>
    %cst_25 = arith.constant dense<0.000000e+00> : vector<64x32xf32>
    %44 = tpu.matmul %41, %43, %cst_25 {dimension_numbers = #tpu.dot_dimension_numbers<[1], [0], [0], [1], [0, 0, 1, 1], [], []>} : vector<64x16xbf16>, vector<16x32xbf16>, vector<64x32xf32> -> vector<64x32xf32>
    %45 = arith.addf %40, %44 : vector<64x32xf32>
    %46 = vector.extract_strided_slice %10 {offsets = [16, 0], sizes = [64, 16], strides = [1, 1]} : vector<80x16xbf16> to vector<64x16xbf16>
    %c2 = arith.constant 2 : index
    %c0_26 = arith.constant 0 : index
    %c0_27 = arith.constant 0 : index
    %47 = vector.load %arg3[%c2, %c0_26, %c0_27] : memref<3x48x32xbf16, #tpu.memory_space<vmem>>, vector<1x16x32xbf16>
    %48 = vector.shape_cast %47 : vector<1x16x32xbf16> to vector<16x32xbf16>
    %cst_28 = arith.constant dense<0.000000e+00> : vector<64x32xf32>
    %49 = tpu.matmul %46, %48, %cst_28 {dimension_numbers = #tpu.dot_dimension_numbers<[1], [0], [0], [1], [0, 0, 1, 1], [], []>} : vector<64x16xbf16>, vector<16x32xbf16>, vector<64x32xf32> -> vector<64x32xf32>
    %50 = arith.addf %45, %49 : vector<64x32xf32>
    %51 = vector.extract_strided_slice %12 {offsets = [16, 0], sizes = [64, 16], strides = [1, 1]} : vector<80x16xbf16> to vector<64x16xbf16>
    %c2_29 = arith.constant 2 : index
    %c16_30 = arith.constant 16 : index
    %c0_31 = arith.constant 0 : index
    %52 = vector.load %arg3[%c2_29, %c16_30, %c0_31] : memref<3x48x32xbf16, #tpu.memory_space<vmem>>, vector<1x16x32xbf16>
    %53 = vector.shape_cast %52 : vector<1x16x32xbf16> to vector<16x32xbf16>
    %cst_32 = arith.constant dense<0.000000e+00> : vector<64x32xf32>
    %54 = tpu.matmul %51, %53, %cst_32 {dimension_numbers = #tpu.dot_dimension_numbers<[1], [0], [0], [1], [0, 0, 1, 1], [], []>} : vector<64x16xbf16>, vector<16x32xbf16>, vector<64x32xf32> -> vector<64x32xf32>
    %55 = arith.addf %50, %54 : vector<64x32xf32>
    %56 = vector.extract_strided_slice %14 {offsets = [16, 0], sizes = [64, 16], strides = [1, 1]} : vector<80x16xbf16> to vector<64x16xbf16>
    %c2_33 = arith.constant 2 : index
    %c32_34 = arith.constant 32 : index
    %c0_35 = arith.constant 0 : index
    %57 = vector.load %arg3[%c2_33, %c32_34, %c0_35] : memref<3x48x32xbf16, #tpu.memory_space<vmem>>, vector<1x16x32xbf16>
    %58 = vector.shape_cast %57 : vector<1x16x32xbf16> to vector<16x32xbf16>
    %cst_36 = arith.constant dense<0.000000e+00> : vector<64x32xf32>
    %59 = tpu.matmul %56, %58, %cst_36 {dimension_numbers = #tpu.dot_dimension_numbers<[1], [0], [0], [1], [0, 0, 1, 1], [], []>} : vector<64x16xbf16>, vector<16x32xbf16>, vector<64x32xf32> -> vector<64x32xf32>
    %60 = arith.addf %55, %59 : vector<64x32xf32>
    %c0_37 = arith.constant 0 : index
    %c0_38 = arith.constant 0 : index
    %61 = vector.load %arg4[%c0_37, %c0_38] : memref<1x32xf32, #tpu.memory_space<vmem>>, vector<1x32xf32>
    %62 = vector.broadcast %61 : vector<1x32xf32> to vector<64x32xf32>
    %63 = arith.addf %60, %62 : vector<64x32xf32>
    %64 = vector.shape_cast %63 : vector<64x32xf32> to vector<8x8x32xf32>
    %cst_39 = arith.constant 0.000000e+00 : f32
    %65 = vector.broadcast %cst_39 : f32 to vector<8x8x32xf32>
    %66 = arith.maximumf %64, %65 : vector<8x8x32xf32>
    %c0_40 = arith.constant 0 : index
    %c0_41 = arith.constant 0 : index
    %c0_42 = arith.constant 0 : index
    %c0_43 = arith.constant 0 : index
    %67 = vector.load %arg5[%c0_40, %c0_41, %c0_42, %c0_43] : memref<1x8x8x32xf32, #tpu.memory_space<vmem>>, vector<1x8x8x32xf32>
    %68 = vector.shape_cast %67 : vector<1x8x8x32xf32> to vector<8x8x32xf32>
    %69 = vector.shape_cast %66 : vector<8x8x32xf32> to vector<1x8x8x32xf32>
    tpu.vector_store %arg5[%c0_40, %c0_41, %c0_42, %c0_43], %69 {strides = array<i32>} : memref<1x8x8x32xf32, #tpu.memory_space<vmem>>, vector<1x8x8x32xf32>,
    return
  }
  func.func @transform_0(%arg0: i32, %arg1: i32) -> (i32, i32, i32, i32) {
    %c0_i32 = arith.constant 0 : i32
    %c0_i32_0 = arith.constant 0 : i32
    %c0_i32_1 = arith.constant 0 : i32
    %c0_i32_2 = arith.constant 0 : i32
    return %arg0, %c0_i32, %c0_i32_0, %c0_i32_1 : i32, i32, i32, i32
  }
  func.func @transform_1(%arg0: i32, %arg1: i32) -> (i32, i32, i32) {
    %c0_i32 = arith.constant 0 : i32
    %c0_i32_0 = arith.constant 0 : i32
    %c0_i32_1 = arith.constant 0 : i32
    return %c0_i32, %c0_i32_0, %arg1 : i32, i32, i32
  }
  func.func @transform_2(%arg0: i32, %arg1: i32) -> (i32, i32) {
    %c0_i32 = arith.constant 0 : i32
    %c0_i32_0 = arith.constant 0 : i32
    return %c0_i32, %arg1 : i32, i32
  }
  func.func @transform_3(%arg0: i32, %arg1: i32) -> (i32, i32, i32, i32) {
    %c0_i32 = arith.constant 0 : i32
    %c0_i32_0 = arith.constant 0 : i32
    %c0_i32_1 = arith.constant 0 : i32
    return %arg0, %c0_i32, %c0_i32_0, %arg1 : i32, i32, i32, i32
  }
}

</mosaic_0001>

<llo_original>
// kernel: tpu_custom_call.1
$region0: #{tpu_custom_call.1}
  #allocation0 [shape = 'u32[]', space=smem, size = 0x4, offset = 0x4, fixed_abs, tag = 'smem constant byte address 0x4 - core index']
  #allocation1 [shape = 'u32[144,128]{1,0:T(1,128)}', space=vmem, size = 0x12000, scoped, tag = 'internal scratch']
  %s0 = inlined_call_operand.vmem [shape: f32[1,8,8,16], index: 0, kind: input, shape index: {}]
  %s1 = inlined_call_operand.vmem [shape: bf16[3,48,32], index: 1, kind: input, shape index: {}]
  %s2 = inlined_call_operand.vmem [shape: f32[1,32], index: 2, kind: input, shape index: {}]
  %s3 = inlined_call_operand.hbm [shape: f32[1,8,8,32], index: 3, kind: output, shape index: {}]
  %s4 = sld [smem:[#allocation0]]
  $region22: #{tpu_custom_call.1} parent=0
    _
  %s6 = ssub.s32 1, %s4
  %s7 = scalar_select 0, %s6, %s4
  $region1: #{tpu_custom_call.1} parent=0
    #allocation2 [shape = 'u8[32768]{0}', space=vmem, size = 0x8000, scoped, tag = 'output window, operand 0, single buffered']
    #allocation3 [shape = 's32[1]{0}', space=sflag, size = 0x4, scoped, tag = 'scoped memory for tpu_custom_call.1']
    %8 = vsyncpa [#allocation3], 0
    // Predicated region
    $region2: #{tpu_custom_call.1} parent=1 // pred_check
      _
    $region3: #{tpu_custom_call.1} parent=1 // pred_check_branch
      %10 = sbr.rel (0) target = $region5
    $region4: #{tpu_custom_call.1} parent=1 // pred_region
      _
    $region5: #{tpu_custom_call.1} parent=1 // pred_fallthru
      _
    // Predicated region
    $region6: #{tpu_custom_call.1} parent=1 // pred_check
      _
    $region7: #{tpu_custom_call.1} parent=1 // pred_check_branch
      %12 = sbr.rel (0) target = $region9
    $region8: #{tpu_custom_call.1} parent=1 // pred_region
      _
    $region9: #{tpu_custom_call.1} parent=1 // pred_fallthru
      _
    // Predicated region
    $region10: #{tpu_custom_call.1} parent=1 // pred_check
      _
    $region11: #{tpu_custom_call.1} parent=1 // pred_check_branch
      %14 = sbr.rel (0) target = $region13
    $region12: #{tpu_custom_call.1} parent=1 // pred_region
      _
    $region13: #{tpu_custom_call.1} parent=1 // pred_fallthru
      _
    %v16 = vld [vmem:[%s0] sm:$0xff]
    %v17 = vld [vmem:[%s0 + $0x8] sm:$0xff]
    %v18 = vld [vmem:[%s0 + $0x10] sm:$0xff]
    %v19 = vld [vmem:[%s0 + $0x18] sm:$0xff]
    %v20 = vld [vmem:[%s0 + $0x20] sm:$0xff]
    %v21 = vld [vmem:[%s0 + $0x28] sm:$0xff]
    %v22 = vld [vmem:[%s0 + $0x30] sm:$0xff]
    %v23 = vld [vmem:[%s0 + $0x38] sm:$0xff]
    %v24 = vpack.c.bf16 %v16, %v16
    %v25 = vpack.c.bf16 %v17, %v17
    %v26 = vpack.c.bf16 %v18, %v18
    %v27 = vpack.c.bf16 %v19, %v19
    %v28 = vpack.c.bf16 %v20, %v20
    %v29 = vpack.c.bf16 %v21, %v21
    %v30 = vpack.c.bf16 %v22, %v22
    %v31 = vpack.c.bf16 %v23, %v23
    %v33 = vshrl.u32 %v24, 16
    %v35 = vrot.slane %v33, 7
    %v36 = vshll.u32 %v24, 16
    %v38 = vor.u32 %v35, %v36
    %v40 = vshrl.u32 %v25, 16
    %v42 = vrot.slane %v40, 7
    %v43 = vshll.u32 %v25, 16
    %v45 = vor.u32 %v42, %v43
    %v47 = vshrl.u32 %v26, 16
    %v49 = vrot.slane %v47, 7
    %v50 = vshll.u32 %v26, 16
    %v52 = vor.u32 %v49, %v50
    %v54 = vshrl.u32 %v27, 16
    %v56 = vrot.slane %v54, 7
    %v57 = vshll.u32 %v27, 16
    %v59 = vor.u32 %v56, %v57
    %v61 = vshrl.u32 %v28, 16
    %v63 = vrot.slane %v61, 7
    %v64 = vshll.u32 %v28, 16
    %v66 = vor.u32 %v63, %v64
    %v68 = vshrl.u32 %v29, 16
    %v70 = vrot.slane %v68, 7
    %v71 = vshll.u32 %v29, 16
    %v73 = vor.u32 %v70, %v71
    %v75 = vshrl.u32 %v30, 16
    %v77 = vrot.slane %v75, 7
    %v78 = vshll.u32 %v30, 16
    %v80 = vor.u32 %v77, %v78
    %v82 = vshrl.u32 %v31, 16
    %v84 = vrot.slane %v82, 7
    %v85 = vshll.u32 %v31, 16
    %v87 = vor.u32 %v84, %v85
    %vm96 = vcmask 1040384
    %vm97 = vsmask.f32 256
    %vm98 = vmand %vm96, %vm97
    %v99 = vsel %vm98, 0, %v38
    %v100 = vsel %vm98, 0, %v45
    %v101 = vsel %vm98, 0, %v52
    %v102 = vsel %vm98, 0, %v59
    %v103 = vsel %vm98, 0, %v66
    %v104 = vsel %vm98, 0, %v73
    %v105 = vsel %vm98, 0, %v80
    %v106 = vsel %vm98, 0, %v87
    %v107 = vrot.slane %v36, 1
    %v108 = vor.u32 %v33, %v107
    %v109 = vrot.slane %v43, 1
    %v110 = vor.u32 %v40, %v109
    %v111 = vrot.slane %v50, 1
    %v112 = vor.u32 %v47, %v111
    %v113 = vrot.slane %v57, 1
    %v114 = vor.u32 %v54, %v113
    %v115 = vrot.slane %v64, 1
    %v116 = vor.u32 %v61, %v115
    %v117 = vrot.slane %v71, 1
    %v118 = vor.u32 %v68, %v117
    %v119 = vrot.slane %v78, 1
    %v120 = vor.u32 %v75, %v119
    %v121 = vrot.slane %v85, 1
    %v122 = vor.u32 %v82, %v121
    %vm131 = vcmask 1043456
    %vm132 = vsmask.f32 3328
    %vm133 = vmand %vm131, %vm132
    %v134 = vsel %vm133, %v108, 0
    %v135 = vsel %vm133, %v110, 0
    %v136 = vsel %vm133, %v112, 0
    %v137 = vsel %vm133, %v114, 0
    %v138 = vsel %vm133, %v116, 0
    %v139 = vsel %vm133, %v118, 0
    %v140 = vsel %vm133, %v120, 0
    %v141 = vsel %vm133, %v122, 0
    %v142 = vld [vmem:[%s1] sm:$0xf]
    %v143 = vld [vmem:[%s1 + $0x4] sm:$0xf]
    %v144 = vld [vmem:[%s1 + $0x8] sm:$0xf]
    %v145 = vld [vmem:[%s1 + $0xc] sm:$0xf]
    %v154 = vunpack.c.l.b16 0
    %v155 = vunpack.c.l.b16 %v24
    %v156 = vunpack.c.l.b16 %v25
    %v157 = vunpack.c.l.b16 %v26
    %v158 = vunpack.c.l.b16 %v27
    %v159 = vunpack.c.l.b16 %v28
    %v160 = vunpack.c.l.b16 %v29
    %v161 = vunpack.c.l.b16 %v30
    %v162 = vpack.c.b16 %v155, %v154
    %v163 = vpack.c.b16 %v157, %v156
    %v164 = vpack.c.b16 %v159, %v158
    %v165 = vpack.c.b16 %v161, %v160
    %v168 = vunpack.c.l.b16 %v144
    %v169 = vunpack.c.l.b16 %v145
    %v170 = vpack.c.b16 %v169, %v168
    %vm172 = vcmask 130048
    %v174 = vsel %vm172, %v162, 0
    %v177 = vsel %vm172, %v163, 0
    %v180 = vsel %vm172, %v164, 0
    %v183 = vsel %vm172, %v165, 0
    %185 = vmatprep.subr.bf16.mxu0 0
    %186 = vmatpush1.bf16.msra.mxu0 %v170
    %187 = vmatprep.subr.bf16.mxu0 0
    %188 = vmatpush1.bf16.msra.mxu0 0
    %189 = vmatprep.subr.bf16.mxu0 0
    %190 = vmatpush1.bf16.msra.mxu0 0
    %191 = vmatprep.subr.bf16.mxu0 0
    %192 = vmatpush1.bf16.msra.mxu0 0
    %193 = vmatprep.subr.bf16.mxu0 0
    %194 = vmatpush1.bf16.msra.mxu0 0
    %195 = vmatprep.subr.bf16.mxu0 0
    %196 = vmatpush1.bf16.msra.mxu0 0
    %197 = vmatprep.subr.bf16.mxu0 0
    %198 = vmatpush1.bf16.msra.mxu0 0
    %199 = vmatprep.subr.bf16.mxu0 0
    %200 = vmatpush1.bf16.msra.mxu0 0
    %201 = vmatprep.subr.bf16.mxu0 0
    %202 = vmatpush1.bf16.msra.mxu0 0
    %203 = vmatprep.subr.bf16.mxu0 0
    %204 = vmatpush1.bf16.msra.mxu0 0
    %205 = vmatprep.subr.bf16.mxu0 0
    %206 = vmatpush1.bf16.msra.mxu0 0
    %207 = vmatprep.subr.bf16.mxu0 0
    %208 = vmatpush1.bf16.msra.mxu0 0
    %209 = vmatprep.subr.bf16.mxu0 0
    %210 = vmatpush1.bf16.msra.mxu0 0
    %211 = vmatprep.subr.bf16.mxu0 0
    %212 = vmatpush1.bf16.msra.mxu0 0
    %213 = vmatprep.subr.bf16.mxu0 0
    %214 = vmatpush1.bf16.msra.mxu0 0
    %215 = vmatprep.subr.bf16.mxu0 0
    %216 = vmatpush1.bf16.msra.mxu0 0
    %217 = vmatprep.mubr.bf16.mxu0 0
    %218 = vmatmul.mubr.bf16.gmra.mrb[0].mxu0 %v174
    %v219 = vpop.f32.mrb[0].mxu0
    %v220 = vadd.f32 0.0, %v219
    %v221 = vpop.f32.mrb[0].mxu0
    %v222 = vpop.f32.mrb[0].mxu0
    %v223 = vadd.f32 0.0, %v222
    %v224 = vpop.f32.mrb[0].mxu0
    %225 = vmatprep.mubr.bf16.mxu0 0
    %226 = vmatmul.mubr.bf16.gmra.mrb[0].mxu0 %v177
    %v227 = vpop.f32.mrb[0].mxu0
    %v228 = vadd.f32 0.0, %v227
    %v229 = vpop.f32.mrb[0].mxu0
    %v230 = vpop.f32.mrb[0].mxu0
    %v231 = vadd.f32 0.0, %v230
    %v232 = vpop.f32.mrb[0].mxu0
    %233 = vmatprep.mubr.bf16.mxu0 0
    %234 = vmatmul.mubr.bf16.gmra.mrb[0].mxu0 %v180
    %v235 = vpop.f32.mrb[0].mxu0
    %v236 = vadd.f32 0.0, %v235
    %v237 = vpop.f32.mrb[0].mxu0
    %v238 = vpop.f32.mrb[0].mxu0
    %v239 = vadd.f32 0.0, %v238
    %v240 = vpop.f32.mrb[0].mxu0
    %241 = vmatprep.mubr.bf16.mxu0 0
    %242 = vmatmul.mubr.bf16.gmra.mrb[0].mxu0 %v183
    %v243 = vpop.f32.mrb[0].mxu0
    %v244 = vadd.f32 0.0, %v243
    %v245 = vpop.f32.mrb[0].mxu0
    %v246 = vpop.f32.mrb[0].mxu0
    %v247 = vadd.f32 0.0, %v246
    %v248 = vpop.f32.mrb[0].mxu0
    %249 = vdwg.mxu0
    %v257 = vunpack.c.l.b16 %v99
    %v258 = vunpack.c.l.b16 %v100
    %v259 = vunpack.c.l.b16 %v101
    %v260 = vunpack.c.l.b16 %v102
    %v261 = vunpack.c.l.b16 %v103
    %v262 = vunpack.c.l.b16 %v104
    %v263 = vunpack.c.l.b16 %v105
    %v264 = vpack.c.b16 %v257, %v154
    %v265 = vpack.c.b16 %v259, %v258
    %v266 = vpack.c.b16 %v261, %v260
    %v267 = vpack.c.b16 %v263, %v262
    %v270 = vunpack.c.l.b16 %v142
    %v271 = vunpack.c.l.b16 %v143
    %v272 = vpack.c.b16 %v271, %v270
    %v275 = vsel %vm172, %v264, 0
    %v278 = vsel %vm172, %v265, 0
    %v281 = vsel %vm172, %v266, 0
    %v284 = vsel %vm172, %v267, 0
    %286 = vmatprep.subr.bf16.mxu0 0
    %287 = vmatpush1.bf16.msra.mxu0 %v272
    %288 = vmatprep.subr.bf16.mxu0 0
    %289 = vmatpush1.bf16.msra.mxu0 0
    %290 = vmatprep.subr.bf16.mxu0 0
    %291 = vmatpush1.bf16.msra.mxu0 0
    %292 = vmatprep.subr.bf16.mxu0 0
    %293 = vmatpush1.bf16.msra.mxu0 0
    %294 = vmatprep.subr.bf16.mxu0 0
    %295 = vmatpush1.bf16.msra.mxu0 0
    %296 = vmatprep.subr.bf16.mxu0 0
    %297 = vmatpush1.bf16.msra.mxu0 0
    %298 = vmatprep.subr.bf16.mxu0 0
    %299 = vmatpush1.bf16.msra.mxu0 0
    %300 = vmatprep.subr.bf16.mxu0 0
    %301 = vmatpush1.bf16.msra.mxu0 0
    %302 = vmatprep.subr.bf16.mxu0 0
    %303 = vmatpush1.bf16.msra.mxu0 0
    %304 = vmatprep.subr.bf16.mxu0 0
    %305 = vmatpush1.bf16.msra.mxu0 0
    %306 = vmatprep.subr.bf16.mxu0 0
    %307 = vmatpush1.bf16.msra.mxu0 0
    %308 = vmatprep.subr.bf16.mxu0 0
    %309 = vmatpush1.bf16.msra.mxu0 0
    %310 = vmatprep.subr.bf16.mxu0 0
    %311 = vmatpush1.bf16.msra.mxu0 0
    %312 = vmatprep.subr.bf16.mxu0 0
    %313 = vmatpush1.bf16.msra.mxu0 0
    %314 = vmatprep.subr.bf16.mxu0 0
    %315 = vmatpush1.bf16.msra.mxu0 0
    %316 = vmatprep.subr.bf16.mxu0 0
    %317 = vmatpush1.bf16.msra.mxu0 0
    %318 = vmatprep.mubr.bf16.mxu0 0
    %319 = vmatmul.mubr.bf16.gmra.mrb[0].mxu0 %v275
    %v320 = vpop.f32.mrb[0].mxu0
    %v321 = vadd.f32 %v220, %v320
    %v322 = vpop.f32.mrb[0].mxu0
    %v323 = vpop.f32.mrb[0].mxu0
    %v324 = vadd.f32 %v223, %v323
    %v325 = vpop.f32.mrb[0].mxu0
    %326 = vmatprep.mubr.bf16.mxu0 0
    %327 = vmatmul.mubr.bf16.gmra.mrb[0].mxu0 %v278
    %v328 = vpop.f32.mrb[0].mxu0
    %v329 = vadd.f32 %v228, %v328
    %v330 = vpop.f32.mrb[0].mxu0
    %v331 = vpop.f32.mrb[0].mxu0
    %v332 = vadd.f32 %v231, %v331
    %v333 = vpop.f32.mrb[0].mxu0
    %334 = vmatprep.mubr.bf16.mxu0 0
    %335 = vmatmul.mubr.bf16.gmra.mrb[0].mxu0 %v281
    %v336 = vpop.f32.mrb[0].mxu0
    %v337 = vadd.f32 %v236, %v336
    %v338 = vpop.f32.mrb[0].mxu0
    %v339 = vpop.f32.mrb[0].mxu0
    %v340 = vadd.f32 %v239, %v339
    %v341 = vpop.f32.mrb[0].mxu0
    %342 = vmatprep.mubr.bf16.mxu0 0
    %343 = vmatmul.mubr.bf16.gmra.mrb[0].mxu0 %v284
    %v344 = vpop.f32.mrb[0].mxu0
    %v345 = vadd.f32 %v244, %v344
    %v346 = vpop.f32.mrb[0].mxu0
    %v347 = vpop.f32.mrb[0].mxu0
    %v348 = vadd.f32 %v247, %v347
    %v349 = vpop.f32.mrb[0].mxu0
    %350 = vdwg.mxu0
    %v351 = vld [vmem:[%s1 + $0x10] sm:$0xf]
    %v352 = vld [vmem:[%s1 + $0x14] sm:$0xf]
    %v360 = vunpack.c.l.b16 %v134
    %v361 = vunpack.c.l.b16 %v135
    %v362 = vunpack.c.l.b16 %v136
    %v363 = vunpack.c.l.b16 %v137
    %v364 = vunpack.c.l.b16 %v138
    %v365 = vunpack.c.l.b16 %v139
    %v366 = vunpack.c.l.b16 %v140
    %v367 = vpack.c.b16 %v360, %v154
    %v368 = vpack.c.b16 %v362, %v361
    %v369 = vpack.c.b16 %v364, %v363
    %v370 = vpack.c.b16 %v366, %v365
    %v373 = vunpack.c.l.b16 %v351
    %v374 = vunpack.c.l.b16 %v352
    %v375 = vpack.c.b16 %v374, %v373
    %v378 = vsel %vm172, %v367, 0
    %v381 = vsel %vm172, %v368, 0
    %v384 = vsel %vm172, %v369, 0
    %v387 = vsel %vm172, %v370, 0
    %389 = vmatprep.subr.bf16.mxu0 0
    %390 = vmatpush1.bf16.msra.mxu0 %v375
    %391 = vmatprep.subr.bf16.mxu0 0
    %392 = vmatpush1.bf16.msra.mxu0 0
    %393 = vmatprep.subr.bf16.mxu0 0
    %394 = vmatpush1.bf16.msra.mxu0 0
    %395 = vmatprep.subr.bf16.mxu0 0
    %396 = vmatpush1.bf16.msra.mxu0 0
    %397 = vmatprep.subr.bf16.mxu0 0
    %398 = vmatpush1.bf16.msra.mxu0 0
    %399 = vmatprep.subr.bf16.mxu0 0
    %400 = vmatpush1.bf16.msra.mxu0 0
    %401 = vmatprep.subr.bf16.mxu0 0
    %402 = vmatpush1.bf16.msra.mxu0 0
    %403 = vmatprep.subr.bf16.mxu0 0
    %404 = vmatpush1.bf16.msra.mxu0 0
    %405 = vmatprep.subr.bf16.mxu0 0
    %406 = vmatpush1.bf16.msra.mxu0 0
    %407 = vmatprep.subr.bf16.mxu0 0
    %408 = vmatpush1.bf16.msra.mxu0 0
    %409 = vmatprep.subr.bf16.mxu0 0
    %410 = vmatpush1.bf16.msra.mxu0 0
    %411 = vmatprep.subr.bf16.mxu0 0
    %412 = vmatpush1.bf16.msra.mxu0 0
    %413 = vmatprep.subr.bf16.mxu0 0
    %414 = vmatpush1.bf16.msra.mxu0 0
    %415 = vmatprep.subr.bf16.mxu0 0
    %416 = vmatpush1.bf16.msra.mxu0 0
    %417 = vmatprep.subr.bf16.mxu0 0
    %418 = vmatpush1.bf16.msra.mxu0 0
    %419 = vmatprep.subr.bf16.mxu0 0
    %420 = vmatpush1.bf16.msra.mxu0 0
    %421 = vmatprep.mubr.bf16.mxu0 0
    %422 = vmatmul.mubr.bf16.gmra.mrb[0].mxu0 %v378
    %v423 = vpop.f32.mrb[0].mxu0
    %v424 = vadd.f32 0.0, %v423
    %v425 = vpop.f32.mrb[0].mxu0
    %v426 = vpop.f32.mrb[0].mxu0
    %v427 = vadd.f32 0.0, %v426
    %v428 = vpop.f32.mrb[0].mxu0
    %429 = vmatprep.mubr.bf16.mxu0 0
    %430 = vmatmul.mubr.bf16.gmra.mrb[0].mxu0 %v381
    %v431 = vpop.f32.mrb[0].mxu0
    %v432 = vadd.f32 0.0, %v431
    %v433 = vpop.f32.mrb[0].mxu0
    %v434 = vpop.f32.mrb[0].mxu0
    %v435 = vadd.f32 0.0, %v434
    %v436 = vpop.f32.mrb[0].mxu0
    %437 = vmatprep.mubr.bf16.mxu0 0
    %438 = vmatmul.mubr.bf16.gmra.mrb[0].mxu0 %v384
    %v439 = vpop.f32.mrb[0].mxu0
    %v440 = vadd.f32 0.0, %v439
    %v441 = vpop.f32.mrb[0].mxu0
    %v442 = vpop.f32.mrb[0].mxu0
    %v443 = vadd.f32 0.0, %v442
    %v444 = vpop.f32.mrb[0].mxu0
    %445 = vmatprep.mubr.bf16.mxu0 0
    %446 = vmatmul.mubr.bf16.gmra.mrb[0].mxu0 %v387
    %v447 = vpop.f32.mrb[0].mxu0
    %v448 = vadd.f32 0.0, %v447
    %v449 = vpop.f32.mrb[0].mxu0
    %v450 = vpop.f32.mrb[0].mxu0
    %v451 = vadd.f32 0.0, %v450
    %v452 = vpop.f32.mrb[0].mxu0
    %453 = vdwg.mxu0
    %v454 = vadd.f32 %v321, %v424
    %v455 = vadd.f32 %v324, %v427
    %v456 = vadd.f32 %v329, %v432
    %v457 = vadd.f32 %v332, %v435
    %v458 = vadd.f32 %v337, %v440
    %v459 = vadd.f32 %v340, %v443
    %v460 = vadd.f32 %v345, %v448
    %v461 = vadd.f32 %v348, %v451
    %s462 = scalar_lea.vmem %s1, 24
    %v463 = vld [vmem:[%s462] sm:$0xf]
    %v464 = vld [vmem:[%s462 + $0x4] sm:$0xf]
    %v466 = vunpack.c.l.b16 %v106
    %v467 = vpack.c.b16 %v258, %v257
    %v468 = vpack.c.b16 %v260, %v259
    %v469 = vpack.c.b16 %v262, %v261
    %v470 = vpack.c.b16 %v466, %v263
    %v473 = vunpack.c.l.b16 %v463
    %v474 = vunpack.c.l.b16 %v464
    %v475 = vpack.c.b16 %v474, %v473
    %v478 = vsel %vm172, %v467, 0
    %v481 = vsel %vm172, %v468, 0
    %v484 = vsel %vm172, %v469, 0
    %v487 = vsel %vm172, %v470, 0
    %489 = vmatprep.subr.bf16.mxu0 0
    %490 = vmatpush1.bf16.msra.mxu0 %v475
    %491 = vmatprep.subr.bf16.mxu0 0
    %492 = vmatpush1.bf16.msra.mxu0 0
    %493 = vmatprep.subr.bf16.mxu0 0
    %494 = vmatpush1.bf16.msra.mxu0 0
    %495 = vmatprep.subr.bf16.mxu0 0
    %496 = vmatpush1.bf16.msra.mxu0 0
    %497 = vmatprep.subr.bf16.mxu0 0
    %498 = vmatpush1.bf16.msra.mxu0 0
    %499 = vmatprep.subr.bf16.mxu0 0
    %500 = vmatpush1.bf16.msra.mxu0 0
    %501 = vmatprep.subr.bf16.mxu0 0
    %502 = vmatpush1.bf16.msra.mxu0 0
    %503 = vmatprep.subr.bf16.mxu0 0
    %504 = vmatpush1.bf16.msra.mxu0 0
    %505 = vmatprep.subr.bf16.mxu0 0
    %506 = vmatpush1.bf16.msra.mxu0 0
    %507 = vmatprep.subr.bf16.mxu0 0
    %508 = vmatpush1.bf16.msra.mxu0 0
    %509 = vmatprep.subr.bf16.mxu0 0
    %510 = vmatpush1.bf16.msra.mxu0 0
    %511 = vmatprep.subr.bf16.mxu0 0
    %512 = vmatpush1.bf16.msra.mxu0 0
    %513 = vmatprep.subr.bf16.mxu0 0
    %514 = vmatpush1.bf16.msra.mxu0 0
    %515 = vmatprep.subr.bf16.mxu0 0
    %516 = vmatpush1.bf16.msra.mxu0 0
    %517 = vmatprep.subr.bf16.mxu0 0
    %518 = vmatpush1.bf16.msra.mxu0 0
    %519 = vmatprep.subr.bf16.mxu0 0
    %520 = vmatpush1.bf16.msra.mxu0 0
    %521 = vmatprep.mubr.bf16.mxu0 0
    %522 = vmatmul.mubr.bf16.gmra.mrb[0].mxu0 %v478
    %v523 = vpop.f32.mrb[0].mxu0
    %v524 = vadd.f32 0.0, %v523
    %v525 = vpop.f32.mrb[0].mxu0
    %v526 = vpop.f32.mrb[0].mxu0
    %v527 = vadd.f32 0.0, %v526
    %v528 = vpop.f32.mrb[0].mxu0
    %529 = vmatprep.mubr.bf16.mxu0 0
    %530 = vmatmul.mubr.bf16.gmra.mrb[0].mxu0 %v481
    %v531 = vpop.f32.mrb[0].mxu0
    %v532 = vadd.f32 0.0, %v531
    %v533 = vpop.f32.mrb[0].mxu0
    %v534 = vpop.f32.mrb[0].mxu0
    %v535 = vadd.f32 0.0, %v534
    %v536 = vpop.f32.mrb[0].mxu0
    %537 = vmatprep.mubr.bf16.mxu0 0
    %538 = vmatmul.mubr.bf16.gmra.mrb[0].mxu0 %v484
    %v539 = vpop.f32.mrb[0].mxu0
    %v540 = vadd.f32 0.0, %v539
    %v541 = vpop.f32.mrb[0].mxu0
    %v542 = vpop.f32.mrb[0].mxu0
    %v543 = vadd.f32 0.0, %v542
    %v544 = vpop.f32.mrb[0].mxu0
    %545 = vmatprep.mubr.bf16.mxu0 0
    %546 = vmatmul.mubr.bf16.gmra.mrb[0].mxu0 %v487
    %v547 = vpop.f32.mrb[0].mxu0
    %v548 = vadd.f32 0.0, %v547
    %v549 = vpop.f32.mrb[0].mxu0
    %v550 = vpop.f32.mrb[0].mxu0
    %v551 = vadd.f32 0.0, %v550
    %v552 = vpop.f32.mrb[0].mxu0
    %553 = vdwg.mxu0
    %v554 = vadd.f32 %v454, %v524
    %v555 = vadd.f32 %v455, %v527
    %v556 = vadd.f32 %v456, %v532
    %v557 = vadd.f32 %v457, %v535
    %v558 = vadd.f32 %v458, %v540
    %v559 = vadd.f32 %v459, %v543
    %v560 = vadd.f32 %v460, %v548
    %v561 = vadd.f32 %v461, %v551
    %v562 = vld [vmem:[%s462 + $0x8] sm:$0xf]
    %v563 = vld [vmem:[%s462 + $0xc] sm:$0xf]
    %v565 = vunpack.c.l.b16 %v31
    %v566 = vpack.c.b16 %v156, %v155
    %v567 = vpack.c.b16 %v158, %v157
    %v568 = vpack.c.b16 %v160, %v159
    %v569 = vpack.c.b16 %v565, %v161
    %v572 = vunpack.c.l.b16 %v562
    %v573 = vunpack.c.l.b16 %v563
    %v574 = vpack.c.b16 %v573, %v572
    %v577 = vsel %vm172, %v566, 0
    %v580 = vsel %vm172, %v567, 0
    %v583 = vsel %vm172, %v568, 0
    %v586 = vsel %vm172, %v569, 0
    %588 = vmatprep.subr.bf16.mxu0 0
    %589 = vmatpush1.bf16.msra.mxu0 %v574
    %590 = vmatprep.subr.bf16.mxu0 0
    %591 = vmatpush1.bf16.msra.mxu0 0
    %592 = vmatprep.subr.bf16.mxu0 0
    %593 = vmatpush1.bf16.msra.mxu0 0
    %594 = vmatprep.subr.bf16.mxu0 0
    %595 = vmatpush1.bf16.msra.mxu0 0
    %596 = vmatprep.subr.bf16.mxu0 0
    %597 = vmatpush1.bf16.msra.mxu0 0
    %598 = vmatprep.subr.bf16.mxu0 0
    %599 = vmatpush1.bf16.msra.mxu0 0
    %600 = vmatprep.subr.bf16.mxu0 0
    %601 = vmatpush1.bf16.msra.mxu0 0
    %602 = vmatprep.subr.bf16.mxu0 0
    %603 = vmatpush1.bf16.msra.mxu0 0
    %604 = vmatprep.subr.bf16.mxu0 0
    %605 = vmatpush1.bf16.msra.mxu0 0
    %606 = vmatprep.subr.bf16.mxu0 0
    %607 = vmatpush1.bf16.msra.mxu0 0
    %608 = vmatprep.subr.bf16.mxu0 0
    %609 = vmatpush1.bf16.msra.mxu0 0
    %610 = vmatprep.subr.bf16.mxu0 0
    %611 = vmatpush1.bf16.msra.mxu0 0
    %612 = vmatprep.subr.bf16.mxu0 0
    %613 = vmatpush1.bf16.msra.mxu0 0
    %614 = vmatprep.subr.bf16.mxu0 0
    %615 = vmatpush1.bf16.msra.mxu0 0
    %616 = vmatprep.subr.bf16.mxu0 0
    %617 = vmatpush1.bf16.msra.mxu0 0
    %618 = vmatprep.subr.bf16.mxu0 0
    %619 = vmatpush1.bf16.msra.mxu0 0
    %620 = vmatprep.mubr.bf16.mxu0 0
    %621 = vmatmul.mubr.bf16.gmra.mrb[0].mxu0 %v577
    %v622 = vpop.f32.mrb[0].mxu0
    %v623 = vadd.f32 0.0, %v622
    %v624 = vpop.f32.mrb[0].mxu0
    %v625 = vpop.f32.mrb[0].mxu0
    %v626 = vadd.f32 0.0, %v625
    %v627 = vpop.f32.mrb[0].mxu0
    %628 = vmatprep.mubr.bf16.mxu0 0
    %629 = vmatmul.mubr.bf16.gmra.mrb[0].mxu0 %v580
    %v630 = vpop.f32.mrb[0].mxu0
    %v631 = vadd.f32 0.0, %v630
    %v632 = vpop.f32.mrb[0].mxu0
    %v633 = vpop.f32.mrb[0].mxu0
    %v634 = vadd.f32 0.0, %v633
    %v635 = vpop.f32.mrb[0].mxu0
    %636 = vmatprep.mubr.bf16.mxu0 0
    %637 = vmatmul.mubr.bf16.gmra.mrb[0].mxu0 %v583
    %v638 = vpop.f32.mrb[0].mxu0
    %v639 = vadd.f32 0.0, %v638
    %v640 = vpop.f32.mrb[0].mxu0
    %v641 = vpop.f32.mrb[0].mxu0
    %v642 = vadd.f32 0.0, %v641
    %v643 = vpop.f32.mrb[0].mxu0
    %644 = vmatprep.mubr.bf16.mxu0 0
    %645 = vmatmul.mubr.bf16.gmra.mrb[0].mxu0 %v586
    %v646 = vpop.f32.mrb[0].mxu0
    %v647 = vadd.f32 0.0, %v646
    %v648 = vpop.f32.mrb[0].mxu0
    %v649 = vpop.f32.mrb[0].mxu0
    %v650 = vadd.f32 0.0, %v649
    %v651 = vpop.f32.mrb[0].mxu0
    %652 = vdwg.mxu0
    %v653 = vadd.f32 %v554, %v623
    %v654 = vadd.f32 %v555, %v626
    %v655 = vadd.f32 %v556, %v631
    %v656 = vadd.f32 %v557, %v634
    %v657 = vadd.f32 %v558, %v639
    %v658 = vadd.f32 %v559, %v642
    %v659 = vadd.f32 %v560, %v647
    %v660 = vadd.f32 %v561, %v650
    %v661 = vld [vmem:[%s462 + $0x10] sm:$0xf]
    %v662 = vld [vmem:[%s462 + $0x14] sm:$0xf]
    %v664 = vunpack.c.l.b16 %v141
    %v665 = vpack.c.b16 %v361, %v360
    %v666 = vpack.c.b16 %v363, %v362
    %v667 = vpack.c.b16 %v365, %v364
    %v668 = vpack.c.b16 %v664, %v366
    %v671 = vunpack.c.l.b16 %v661
    %v672 = vunpack.c.l.b16 %v662
    %v673 = vpack.c.b16 %v672, %v671
    %v676 = vsel %vm172, %v665, 0
    %v679 = vsel %vm172, %v666, 0
    %v682 = vsel %vm172, %v667, 0
    %v685 = vsel %vm172, %v668, 0
    %687 = vmatprep.subr.bf16.mxu0 0
    %688 = vmatpush1.bf16.msra.mxu0 %v673
    %689 = vmatprep.subr.bf16.mxu0 0
    %690 = vmatpush1.bf16.msra.mxu0 0
    %691 = vmatprep.subr.bf16.mxu0 0
    %692 = vmatpush1.bf16.msra.mxu0 0
    %693 = vmatprep.subr.bf16.mxu0 0
    %694 = vmatpush1.bf16.msra.mxu0 0
    %695 = vmatprep.subr.bf16.mxu0 0
    %696 = vmatpush1.bf16.msra.mxu0 0
    %697 = vmatprep.subr.bf16.mxu0 0
    %698 = vmatpush1.bf16.msra.mxu0 0
    %699 = vmatprep.subr.bf16.mxu0 0
    %700 = vmatpush1.bf16.msra.mxu0 0
    %701 = vmatprep.subr.bf16.mxu0 0
    %702 = vmatpush1.bf16.msra.mxu0 0
    %703 = vmatprep.subr.bf16.mxu0 0
    %704 = vmatpush1.bf16.msra.mxu0 0
    %705 = vmatprep.subr.bf16.mxu0 0
    %706 = vmatpush1.bf16.msra.mxu0 0
    %707 = vmatprep.subr.bf16.mxu0 0
    %708 = vmatpush1.bf16.msra.mxu0 0
    %709 = vmatprep.subr.bf16.mxu0 0
    %710 = vmatpush1.bf16.msra.mxu0 0
    %711 = vmatprep.subr.bf16.mxu0 0
    %712 = vmatpush1.bf16.msra.mxu0 0
    %713 = vmatprep.subr.bf16.mxu0 0
    %714 = vmatpush1.bf16.msra.mxu0 0
    %715 = vmatprep.subr.bf16.mxu0 0
    %716 = vmatpush1.bf16.msra.mxu0 0
    %717 = vmatprep.subr.bf16.mxu0 0
    %718 = vmatpush1.bf16.msra.mxu0 0
    %719 = vmatprep.mubr.bf16.mxu0 0
    %720 = vmatmul.mubr.bf16.gmra.mrb[0].mxu0 %v676
    %v721 = vpop.f32.mrb[0].mxu0
    %v722 = vadd.f32 0.0, %v721
    %v723 = vpop.f32.mrb[0].mxu0
    %v724 = vpop.f32.mrb[0].mxu0
    %v725 = vadd.f32 0.0, %v724
    %v726 = vpop.f32.mrb[0].mxu0
    %727 = vmatprep.mubr.bf16.mxu0 0
    %728 = vmatmul.mubr.bf16.gmra.mrb[0].mxu0 %v679
    %v729 = vpop.f32.mrb[0].mxu0
    %v730 = vadd.f32 0.0, %v729
    %v731 = vpop.f32.mrb[0].mxu0
    %v732 = vpop.f32.mrb[0].mxu0
    %v733 = vadd.f32 0.0, %v732
    %v734 = vpop.f32.mrb[0].mxu0
    %735 = vmatprep.mubr.bf16.mxu0 0
    %736 = vmatmul.mubr.bf16.gmra.mrb[0].mxu0 %v682
    %v737 = vpop.f32.mrb[0].mxu0
    %v738 = vadd.f32 0.0, %v737
    %v739 = vpop.f32.mrb[0].mxu0
    %v740 = vpop.f32.mrb[0].mxu0
    %v741 = vadd.f32 0.0, %v740
    %v742 = vpop.f32.mrb[0].mxu0
    %743 = vmatprep.mubr.bf16.mxu0 0
    %744 = vmatmul.mubr.bf16.gmra.mrb[0].mxu0 %v685
    %v745 = vpop.f32.mrb[0].mxu0
    %v746 = vadd.f32 0.0, %v745
    %v747 = vpop.f32.mrb[0].mxu0
    %v748 = vpop.f32.mrb[0].mxu0
    %v749 = vadd.f32 0.0, %v748
    %v750 = vpop.f32.mrb[0].mxu0
    %751 = vdwg.mxu0
    %v752 = vadd.f32 %v653, %v722
    %v753 = vadd.f32 %v654, %v725
    %v754 = vadd.f32 %v655, %v730
    %v755 = vadd.f32 %v656, %v733
    %v756 = vadd.f32 %v657, %v738
    %v757 = vadd.f32 %v658, %v741
    %v758 = vadd.f32 %v659, %v746
    %v759 = vadd.f32 %v660, %v749
    %s760 = scalar_lea.vmem %s1, 48
    %v761 = vld [vmem:[%s760] sm:$0xf]
    %v762 = vld [vmem:[%s760 + $0x4] sm:$0xf]
    %v763 = vpack.c.b16 %v154, %v466
    %v766 = vunpack.c.l.b16 %v761
    %v767 = vunpack.c.l.b16 %v762
    %v768 = vpack.c.b16 %v767, %v766
    %v771 = vsel %vm172, %v763, 0
    %773 = vmatprep.subr.bf16.mxu0 0
    %774 = vmatpush1.bf16.msra.mxu0 %v768
    %775 = vmatprep.subr.bf16.mxu0 0
    %776 = vmatpush1.bf16.msra.mxu0 0
    %777 = vmatprep.subr.bf16.mxu0 0
    %778 = vmatpush1.bf16.msra.mxu0 0
    %779 = vmatprep.subr.bf16.mxu0 0
    %780 = vmatpush1.bf16.msra.mxu0 0
    %781 = vmatprep.subr.bf16.mxu0 0
    %782 = vmatpush1.bf16.msra.mxu0 0
    %783 = vmatprep.subr.bf16.mxu0 0
    %784 = vmatpush1.bf16.msra.mxu0 0
    %785 = vmatprep.subr.bf16.mxu0 0
    %786 = vmatpush1.bf16.msra.mxu0 0
    %787 = vmatprep.subr.bf16.mxu0 0
    %788 = vmatpush1.bf16.msra.mxu0 0
    %789 = vmatprep.subr.bf16.mxu0 0
    %790 = vmatpush1.bf16.msra.mxu0 0
    %791 = vmatprep.subr.bf16.mxu0 0
    %792 = vmatpush1.bf16.msra.mxu0 0
    %793 = vmatprep.subr.bf16.mxu0 0
    %794 = vmatpush1.bf16.msra.mxu0 0
    %795 = vmatprep.subr.bf16.mxu0 0
    %796 = vmatpush1.bf16.msra.mxu0 0
    %797 = vmatprep.subr.bf16.mxu0 0
    %798 = vmatpush1.bf16.msra.mxu0 0
    %799 = vmatprep.subr.bf16.mxu0 0
    %800 = vmatpush1.bf16.msra.mxu0 0
    %801 = vmatprep.subr.bf16.mxu0 0
    %802 = vmatpush1.bf16.msra.mxu0 0
    %803 = vmatprep.subr.bf16.mxu0 0
    %804 = vmatpush1.bf16.msra.mxu0 0
    %805 = vmatprep.mubr.bf16.mxu0 0
    %806 = vmatmul.mubr.bf16.gmra.mrb[0].mxu0 %v278
    %v807 = vpop.f32.mrb[0].mxu0
    %v808 = vadd.f32 0.0, %v807
    %v809 = vpop.f32.mrb[0].mxu0
    %v810 = vpop.f32.mrb[0].mxu0
    %v811 = vadd.f32 0.0, %v810
    %v812 = vpop.f32.mrb[0].mxu0
    %813 = vmatprep.mubr.bf16.mxu0 0
    %814 = vmatmul.mubr.bf16.gmra.mrb[0].mxu0 %v281
    %v815 = vpop.f32.mrb[0].mxu0
    %v816 = vadd.f32 0.0, %v815
    %v817 = vpop.f32.mrb[0].mxu0
    %v818 = vpop.f32.mrb[0].mxu0
    %v819 = vadd.f32 0.0, %v818
    %v820 = vpop.f32.mrb[0].mxu0
    %821 = vmatprep.mubr.bf16.mxu0 0
    %822 = vmatmul.mubr.bf16.gmra.mrb[0].mxu0 %v284
    %v823 = vpop.f32.mrb[0].mxu0
    %v824 = vadd.f32 0.0, %v823
    %v825 = vpop.f32.mrb[0].mxu0
    %v826 = vpop.f32.mrb[0].mxu0
    %v827 = vadd.f32 0.0, %v826
    %v828 = vpop.f32.mrb[0].mxu0
    %829 = vmatprep.mubr.bf16.mxu0 0
    %830 = vmatmul.mubr.bf16.gmra.mrb[0].mxu0 %v771
    %v831 = vpop.f32.mrb[0].mxu0
    %v832 = vadd.f32 0.0, %v831
    %v833 = vpop.f32.mrb[0].mxu0
    %v834 = vpop.f32.mrb[0].mxu0
    %v835 = vadd.f32 0.0, %v834
    %v836 = vpop.f32.mrb[0].mxu0
    %837 = vdwg.mxu0
    %v838 = vadd.f32 %v752, %v808
    %v839 = vadd.f32 %v753, %v811
    %v840 = vadd.f32 %v754, %v816
    %v841 = vadd.f32 %v755, %v819
    %v842 = vadd.f32 %v756, %v824
    %v843 = vadd.f32 %v757, %v827
    %v844 = vadd.f32 %v758, %v832
    %v845 = vadd.f32 %v759, %v835
    %v846 = vld [vmem:[%s760 + $0x8] sm:$0xf]
    %v847 = vld [vmem:[%s760 + $0xc] sm:$0xf]
    %v848 = vpack.c.b16 %v154, %v565
    %v851 = vunpack.c.l.b16 %v846
    %v852 = vunpack.c.l.b16 %v847
    %v853 = vpack.c.b16 %v852, %v851
    %v856 = vsel %vm172, %v848, 0
    %858 = vmatprep.subr.bf16.mxu0 0
    %859 = vmatpush1.bf16.msra.mxu0 %v853
    %860 = vmatprep.subr.bf16.mxu0 0
    %861 = vmatpush1.bf16.msra.mxu0 0
    %862 = vmatprep.subr.bf16.mxu0 0
    %863 = vmatpush1.bf16.msra.mxu0 0
    %864 = vmatprep.subr.bf16.mxu0 0
    %865 = vmatpush1.bf16.msra.mxu0 0
    %866 = vmatprep.subr.bf16.mxu0 0
    %867 = vmatpush1.bf16.msra.mxu0 0
    %868 = vmatprep.subr.bf16.mxu0 0
    %869 = vmatpush1.bf16.msra.mxu0 0
    %870 = vmatprep.subr.bf16.mxu0 0
    %871 = vmatpush1.bf16.msra.mxu0 0
    %872 = vmatprep.subr.bf16.mxu0 0
    %873 = vmatpush1.bf16.msra.mxu0 0
    %874 = vmatprep.subr.bf16.mxu0 0
    %875 = vmatpush1.bf16.msra.mxu0 0
    %876 = vmatprep.subr.bf16.mxu0 0
    %877 = vmatpush1.bf16.msra.mxu0 0
    %878 = vmatprep.subr.bf16.mxu0 0
    %879 = vmatpush1.bf16.msra.mxu0 0
    %880 = vmatprep.subr.bf16.mxu0 0
    %881 = vmatpush1.bf16.msra.mxu0 0
    %882 = vmatprep.subr.bf16.mxu0 0
    %883 = vmatpush1.bf16.msra.mxu0 0
    %884 = vmatprep.subr.bf16.mxu0 0
    %885 = vmatpush1.bf16.msra.mxu0 0
    %886 = vmatprep.subr.bf16.mxu0 0
    %887 = vmatpush1.bf16.msra.mxu0 0
    %888 = vmatprep.subr.bf16.mxu0 0
    %889 = vmatpush1.bf16.msra.mxu0 0
    %890 = vmatprep.mubr.bf16.mxu0 0
    %891 = vmatmul.mubr.bf16.gmra.mrb[0].mxu0 %v177
    %v892 = vpop.f32.mrb[0].mxu0
    %v893 = vadd.f32 0.0, %v892
    %v894 = vpop.f32.mrb[0].mxu0
    %v895 = vpop.f32.mrb[0].mxu0
    %v896 = vadd.f32 0.0, %v895
    %v897 = vpop.f32.mrb[0].mxu0
    %898 = vmatprep.mubr.bf16.mxu0 0
    %899 = vmatmul.mubr.bf16.gmra.mrb[0].mxu0 %v180
    %v900 = vpop.f32.mrb[0].mxu0
    %v901 = vadd.f32 0.0, %v900
    %v902 = vpop.f32.mrb[0].mxu0
    %v903 = vpop.f32.mrb[0].mxu0
    %v904 = vadd.f32 0.0, %v903
    %v905 = vpop.f32.mrb[0].mxu0
    %906 = vmatprep.mubr.bf16.mxu0 0
    %907 = vmatmul.mubr.bf16.gmra.mrb[0].mxu0 %v183
    %v908 = vpop.f32.mrb[0].mxu0
    %v909 = vadd.f32 0.0, %v908
    %v910 = vpop.f32.mrb[0].mxu0
    %v911 = vpop.f32.mrb[0].mxu0
    %v912 = vadd.f32 0.0, %v911
    %v913 = vpop.f32.mrb[0].mxu0
    %914 = vmatprep.mubr.bf16.mxu0 0
    %915 = vmatmul.mubr.bf16.gmra.mrb[0].mxu0 %v856
    %v916 = vpop.f32.mrb[0].mxu0
    %v917 = vadd.f32 0.0, %v916
    %v918 = vpop.f32.mrb[0].mxu0
    %v919 = vpop.f32.mrb[0].mxu0
    %v920 = vadd.f32 0.0, %v919
    %v921 = vpop.f32.mrb[0].mxu0
    %922 = vdwg.mxu0
    %v923 = vadd.f32 %v838, %v893
    %v924 = vadd.f32 %v839, %v896
    %v925 = vadd.f32 %v840, %v901
    %v926 = vadd.f32 %v841, %v904
    %v927 = vadd.f32 %v842, %v909
    %v928 = vadd.f32 %v843, %v912
    %v929 = vadd.f32 %v844, %v917
    %v930 = vadd.f32 %v845, %v920
    %v931 = vld [vmem:[%s760 + $0x10] sm:$0xf]
    %v932 = vld [vmem:[%s760 + $0x14] sm:$0xf]
    %v933 = vpack.c.b16 %v154, %v664
    %v936 = vunpack.c.l.b16 %v931
    %v937 = vunpack.c.l.b16 %v932
    %v938 = vpack.c.b16 %v937, %v936
    %v941 = vsel %vm172, %v933, 0
    %943 = vmatprep.subr.bf16.mxu0 0
    %944 = vmatpush1.bf16.msra.mxu0 %v938
    %945 = vmatprep.subr.bf16.mxu0 0
    %946 = vmatpush1.bf16.msra.mxu0 0
    %947 = vmatprep.subr.bf16.mxu0 0
    %948 = vmatpush1.bf16.msra.mxu0 0
    %949 = vmatprep.subr.bf16.mxu0 0
    %950 = vmatpush1.bf16.msra.mxu0 0
    %951 = vmatprep.subr.bf16.mxu0 0
    %952 = vmatpush1.bf16.msra.mxu0 0
    %953 = vmatprep.subr.bf16.mxu0 0
    %954 = vmatpush1.bf16.msra.mxu0 0
    %955 = vmatprep.subr.bf16.mxu0 0
    %956 = vmatpush1.bf16.msra.mxu0 0
    %957 = vmatprep.subr.bf16.mxu0 0
    %958 = vmatpush1.bf16.msra.mxu0 0
    %959 = vmatprep.subr.bf16.mxu0 0
    %960 = vmatpush1.bf16.msra.mxu0 0
    %961 = vmatprep.subr.bf16.mxu0 0
    %962 = vmatpush1.bf16.msra.mxu0 0
    %963 = vmatprep.subr.bf16.mxu0 0
    %964 = vmatpush1.bf16.msra.mxu0 0
    %965 = vmatprep.subr.bf16.mxu0 0
    %966 = vmatpush1.bf16.msra.mxu0 0
    %967 = vmatprep.subr.bf16.mxu0 0
    %968 = vmatpush1.bf16.msra.mxu0 0
    %969 = vmatprep.subr.bf16.mxu0 0
    %970 = vmatpush1.bf16.msra.mxu0 0
    %971 = vmatprep.subr.bf16.mxu0 0
    %972 = vmatpush1.bf16.msra.mxu0 0
    %973 = vmatprep.subr.bf16.mxu0 0
    %974 = vmatpush1.bf16.msra.mxu0 0
    %975 = vmatprep.mubr.bf16.mxu0 0
    %976 = vmatmul.mubr.bf16.gmra.mrb[0].mxu0 %v381
    %v977 = vpop.f32.mrb[0].mxu0
    %v978 = vadd.f32 0.0, %v977
    %v979 = vpop.f32.mrb[0].mxu0
    %v980 = vpop.f32.mrb[0].mxu0
    %v981 = vadd.f32 0.0, %v980
    %v982 = vpop.f32.mrb[0].mxu0
    %983 = vmatprep.mubr.bf16.mxu0 0
    %984 = vmatmul.mubr.bf16.gmra.mrb[0].mxu0 %v384
    %v985 = vpop.f32.mrb[0].mxu0
    %v986 = vadd.f32 0.0, %v985
    %v987 = vpop.f32.mrb[0].mxu0
    %v988 = vpop.f32.mrb[0].mxu0
    %v989 = vadd.f32 0.0, %v988
    %v990 = vpop.f32.mrb[0].mxu0
    %991 = vmatprep.mubr.bf16.mxu0 0
    %992 = vmatmul.mubr.bf16.gmra.mrb[0].mxu0 %v387
    %v993 = vpop.f32.mrb[0].mxu0
    %v994 = vadd.f32 0.0, %v993
    %v995 = vpop.f32.mrb[0].mxu0
    %v996 = vpop.f32.mrb[0].mxu0
    %v997 = vadd.f32 0.0, %v996
    %v998 = vpop.f32.mrb[0].mxu0
    %999 = vmatprep.mubr.bf16.mxu0 0
    %1000 = vmatmul.mubr.bf16.gmra.mrb[0].mxu0 %v941
    %v1001 = vpop.f32.mrb[0].mxu0
    %v1002 = vadd.f32 0.0, %v1001
    %v1003 = vpop.f32.mrb[0].mxu0
    %v1004 = vpop.f32.mrb[0].mxu0
    %v1005 = vadd.f32 0.0, %v1004
    %v1006 = vpop.f32.mrb[0].mxu0
    %1007 = vdwg.mxu0
    %v1008 = vadd.f32 %v923, %v978
    %v1009 = vadd.f32 %v924, %v981
    %v1010 = vadd.f32 %v925, %v986
    %v1011 = vadd.f32 %v926, %v989
    %v1012 = vadd.f32 %v927, %v994
    %v1013 = vadd.f32 %v928, %v997
    %v1014 = vadd.f32 %v929, %v1002
    %v1015 = vadd.f32 %v930, %v1005
    %v1016 = vld [vmem:[%s2] sm:$0x1]
    %v1018 = vlaneseq
    %v1019 = vshrl.u32 %v1018, 7
    %v1020 = vsub.s32 0, %v1019
    %v1021 = vrot.slane %v1016, %v1020
    %v1023 = vadd.f32 %v1008, %v1021
    %v1024 = vadd.f32 %v1009, %v1021
    %v1025 = vadd.f32 %v1010, %v1021
    %v1026 = vadd.f32 %v1011, %v1021
    %v1027 = vadd.f32 %v1012, %v1021
    %v1028 = vadd.f32 %v1013, %v1021
    %v1029 = vadd.f32 %v1014, %v1021
    %v1030 = vadd.f32 %v1015, %v1021
    %v1031 = vmax.f32 %v1023, 0.0
    %v1032 = vmax.f32 %v1024, 0.0
    %v1033 = vmax.f32 %v1025, 0.0
    %v1034 = vmax.f32 %v1026, 0.0
    %v1035 = vmax.f32 %v1027, 0.0
    %v1036 = vmax.f32 %v1028, 0.0
    %v1037 = vmax.f32 %v1029, 0.0
    %v1038 = vmax.f32 %v1030, 0.0
    %vm1039 = vcmask 261120
    %1040 = vst.msk [vmem:[#allocation2] sm:$0xff] %vm1039, %v1031
    %1041 = vst.msk [vmem:[#allocation2 + $0x8] sm:$0xff] %vm1039, %v1032
    %1042 = vst.msk [vmem:[#allocation2 + $0x10] sm:$0xff] %vm1039, %v1033
    %1043 = vst.msk [vmem:[#allocation2 + $0x18] sm:$0xff] %vm1039, %v1034
    %1044 = vst.msk [vmem:[#allocation2 + $0x20] sm:$0xff] %vm1039, %v1035
    %1045 = vst.msk [vmem:[#allocation2 + $0x28] sm:$0xff] %vm1039, %v1036
    %1046 = vst.msk [vmem:[#allocation2 + $0x30] sm:$0xff] %vm1039, %v1037
    %1047 = vst.msk [vmem:[#allocation2 + $0x38] sm:$0xff] %vm1039, %v1038
    // Predicated region
    $region14: #{tpu_custom_call.1} parent=1 // pred_check
      _
    $region15: #{tpu_custom_call.1} parent=1 // pred_check_branch
      %1049 = sbr.rel (0) target = $region17
    $region16: #{tpu_custom_call.1} parent=1 // pred_region
      %s1051 = ssub.s32 1024, 1024
      %1052 = vsyncadd [#allocation3], %s1051
      %s1053 = sshll.u32 [#allocation2], 4
      %s1054 = int_to_ptr.vmem [resolvable:$true] %s1053
      %1059 = dma.vmem_to_hbm [thread:$0]  %s1054, 1024, %s3, [#allocation3], 128, 128, 8
    $region17: #{tpu_custom_call.1} parent=1 // pred_fallthru
      _
    // Predicated region
    $region18: #{tpu_custom_call.1} parent=1 // pred_check
      _
    $region19: #{tpu_custom_call.1} parent=1 // pred_check_branch
      %1061 = sbr.rel (0) target = $region21
    $region20: #{tpu_custom_call.1} parent=1 // pred_region
      %1062 = dma.done [#allocation3], 1024
    $region21: #{tpu_custom_call.1} parent=1 // pred_fallthru
      _
    %1063 = vsyncpa [#allocation3], 1

</llo_original>
